<compile_context>
chip_gen: v5e
topology: v5e:2x2
jax: 0.10.0
libtpu: 0.0.40
codegen_flags: <defaults>
</compile_context>

<pallas_src>
import functools

import jax
import jax.numpy as jnp
from jax.experimental import pallas as pl
from jax.experimental.pallas import tpu as pltpu


# ----------------------------------------------------------------------------
# helpers
# ----------------------------------------------------------------------------
def _round_up(a, b):
    return (a + b - 1) // b * b


def _pick_tile(dim, align, max_tile):
    """Return (padded_dim, tile) with tile % align == 0 and padded % tile == 0."""
    p = _round_up(max(dim, align), align)
    t = min(max_tile, p)
    p = _round_up(p, t)
    return p, t


def _largest_aligned_divisor(P, align, max_tile):
    """Largest multiple of `align`, <= max_tile, dividing P (P % align == 0)."""
    if P <= max_tile:
        return P
    t = (max_tile // align) * align
    while t >= align:
        if P % t == 0:
            return t
        t -= align
    return P


def _apply_activation(y, acti_fn):
    if acti_fn == 'none':
        return y
    if acti_fn == 'relu':
        return jnp.maximum(y, 0.0)
    if acti_fn == 'lrelu':                    # nn.LeakyReLU() default slope 0.01
        return jnp.where(y >= 0.0, y, 0.01 * y)
    if acti_fn == 'sigmoid':
        return jax.nn.sigmoid(y)              # EUP path
    if acti_fn == 'tanh':
        return jnp.tanh(y)                    # EUP path
    raise ValueError('Unsupported activation function: ' + str(acti_fn))


# ----------------------------------------------------------------------------
# Pallas kernels
# ----------------------------------------------------------------------------
def _lb_kernel_resident(x_ref, w_ref, ss_ref, o_ref, *, acti_fn):
    """Small-weight fast path: weight + scale/shift VMEM-resident, 1-D grid over M."""
    acc = jnp.dot(x_ref[...], w_ref[...], preferred_element_type=jnp.float32)
    y = acc * ss_ref[0:1, :] + ss_ref[1:2, :]
    o_ref[...] = _apply_activation(y, acti_fn).astype(o_ref.dtype)


def _lb_kernel_tiled(x_ref, w_ref, ss_ref, o_ref, acc_ref, *, acti_fn):
    """General path: 3-D grid, K-reduction into a VMEM f32 accumulator."""
    k = pl.program_id(2)
    partial = jnp.dot(x_ref[...], w_ref[...], preferred_element_type=jnp.float32)

    @pl.when(k == 0)
    def _():
        acc_ref[...] = partial                # first-iteration overwrite (no zero pass)

    @pl.when(k > 0)
    def _():
        acc_ref[...] += partial

    @pl.when(k == pl.num_programs(2) - 1)
    def _():
        y = acc_ref[...] * ss_ref[0:1, :] + ss_ref[1:2, :]
        o_ref[...] = _apply_activation(y, acti_fn).astype(o_ref.dtype)


# ----------------------------------------------------------------------------
# one-time parameter preparation (hoisted out of the per-call path)
# ----------------------------------------------------------------------------
def prepare_linear_block_params(weight, bias=None, *, norm_fn='none',
                                norm_params=None, eps=1e-5,
                                compute_dtype=jnp.bfloat16,
                                k_align=256, n_align=128):
    """weight: (n_out, n_in) in PyTorch nn.Linear layout."""
    f32 = jnp.float32
    weight = jnp.asarray(weight, f32)
    n_out, K = weight.shape

    if norm_fn == 'none':
        scale = jnp.ones((n_out,), f32)
        shift = jnp.asarray(bias, f32) if bias is not None else jnp.zeros((n_out,), f32)
    elif norm_fn == 'batchnorm':
        gamma = jnp.asarray(norm_params['gamma'], f32)
        beta = jnp.asarray(norm_params['beta'], f32)
        mean = jnp.asarray(norm_params['running_mean'], f32)
        var = jnp.asarray(norm_params['running_var'], f32)
        scale = gamma / jnp.sqrt(var + eps)
        shift = beta - mean * scale
    elif norm_fn == 'instancenorm':
        # Unsqueeze(-1) -> InstanceNorm1d(affine=True) over a length-1 spatial
        # dim -> Squeeze(-1): mean == value, var == 0, so the normalized value
        # is exactly 0 and the output is just beta (matmul result discarded).
        beta = jnp.asarray(norm_params['beta'], f32)
        scale = jnp.zeros((n_out,), f32)
        shift = beta
    elif norm_fn == 'switchnorm':
        # TODO(synk): SwitchNorm1d class is not defined in the provided source.
        raise NotImplementedError('switchnorm is not implemented')
    else:
        raise ValueError('Unsupported normalization: ' + str(norm_fn))

    Kp = _round_up(K, k_align)                 # 256-aligned K for v6e/v7x MXU cadence
    Np = _round_up(n_out, n_align)             # lane-dense output

    # Transpose + pad + cast the weight ONCE; pack scale/shift into one array.
    w_p = jnp.pad(weight.T, ((0, Kp - K), (0, Np - n_out))).astype(compute_dtype)
    ss_p = jnp.pad(jnp.stack([scale, shift]), ((0, 0), (0, Np - n_out)))  # (2, Np) f32

    return dict(w=w_p, scale_shift=ss_p, K=K, n_out=n_out, Kp=Kp, Np=Np,
                norm_fn=norm_fn, compute_dtype=compute_dtype)


# ----------------------------------------------------------------------------
# forward
# ----------------------------------------------------------------------------
def linear_block_forward(x, params, *, acti_fn='none', out_dtype=None,
                         tm_max=256, tn_max=256, tk_max=512,
                         force_tiled=False, fast_path_vmem_bytes=12 << 20):
    """x: (M, n_in). Returns (M, n_out)."""
    x = jnp.asarray(x)
    M = x.shape[0]
    out_dtype = out_dtype if out_dtype is not None else x.dtype
    n_out, K = params['n_out'], params['K']
    Kp, Np = params['Kp'], params['Np']
    cdt = params['compute_dtype']

    if params['norm_fn'] == 'instancenorm':
        # Degenerate length-1 InstanceNorm: output == beta regardless of x and W.
        # Perf review: skip all FLOPs / HBM reads -- no pallas_call.
        beta = params['scale_shift'][1, :n_out]
        y = jnp.broadcast_to(beta, (M, n_out))
        return _apply_activation(y, acti_fn).astype(out_dtype)

    assert x.shape[1] == K, (x.shape, K)

    # bf16 operands into the MXU, f32 accumulation inside the kernel.
    x_c = x.astype(cdt)
    Mp, tm = _pick_tile(M, 16, tm_max)         # 16-sublane alignment for bf16 blocks
    x_p = jnp.pad(x_c, ((0, Mp - M), (0, Kp - K)))

    w_p = params['w']
    ss_p = params['scale_shift']
    cbytes = jnp.dtype(cdt).itemsize
    obytes = jnp.dtype(out_dtype).itemsize

    # Fast path only if the resident weight + streamed tiles fit comfortably
    # in scoped VMEM (v5e default 16 MiB is the tightest of the three chips).
    fast_bytes = (Kp * Np * cbytes             # resident weight
                  + 2 * tm * Kp * cbytes       # double-buffered x tile
                  + 2 * tm * Np * obytes       # double-buffered out tile
                  + 2 * Np * 4)                # scale/shift
    use_fast = (not force_tiled) and fast_bytes <= fast_path_vmem_bytes

    if use_fast:
        # ---- small-weight fast path: weight resident, 1-D grid over M -------
        # Give the v7x megacore >=2 M tiles (free on single-TC v5e/v6e).
        if Mp // tm < 2 and Mp >= 32:
            tm = _round_up(-(-Mp // 2), 16)
            Mp = _round_up(Mp, tm)
            x_p = jnp.pad(x_c, ((0, Mp - M), (0, Kp - K)))
        grid = (Mp // tm,)
        out_p = pl.pallas_call(
            functools.partial(_lb_kernel_resident, acti_fn=acti_fn),
            out_shape=jax.ShapeDtypeStruct((Mp, Np), out_dtype),
            grid_spec=pltpu.PrefetchScalarGridSpec(
                num_scalar_prefetch=0,
                grid=grid,
                in_specs=[
                    pl.BlockSpec((tm, Kp), lambda i: (i, 0)),     # x tile (streams)
                    pl.BlockSpec((Kp, Np), lambda i: (0, 0)),     # weight (resident)
                    pl.BlockSpec((2, Np), lambda i: (0, 0)),      # scale/shift (resident)
                ],
                out_specs=pl.BlockSpec((tm, Np), lambda i: (i, 0)),
            ),
            compiler_params=pltpu.CompilerParams(
                dimension_semantics=("parallel",)),
        )(x_p, w_p, ss_p)
    else:
        # ---- general tiled path: 3-D grid with K-reduction accumulator ------
        tn = _largest_aligned_divisor(Np, 128, tn_max)
        if Kp % 256 == 0:
            tk = _largest_aligned_divisor(Kp, 256, max(tk_max, 256))
        else:
            tk = _largest_aligned_divisor(Kp, 128, max(tk_max, 128))
        if (Mp // tm) * (Np // tn) < 2 and Mp >= 32:
            tm = _round_up(-(-Mp // 2), 16)
            Mp = _round_up(Mp, tm)
            x_p = jnp.pad(x_c, ((0, Mp - M), (0, Kp - K)))
        grid = (Mp // tm, Np // tn, Kp // tk)
        out_p = pl.pallas_call(
            functools.partial(_lb_kernel_tiled, acti_fn=acti_fn),
            out_shape=jax.ShapeDtypeStruct((Mp, Np), out_dtype),
            grid_spec=pltpu.PrefetchScalarGridSpec(
                num_scalar_prefetch=0,
                grid=grid,
                in_specs=[
                    pl.BlockSpec((tm, tk), lambda i, j, k: (i, k)),   # x tile
                    pl.BlockSpec((tk, tn), lambda i, j, k: (k, j)),   # W^T tile
                    pl.BlockSpec((2, tn), lambda i, j, k: (0, j)),    # scale/shift
                ],
                out_specs=pl.BlockSpec((tm, tn), lambda i, j, k: (i, j)),
                scratch_shapes=[pltpu.VMEM((tm, tn), jnp.float32)],
            ),
            compiler_params=pltpu.CompilerParams(
                dimension_semantics=("parallel", "parallel", "arbitrary")),
        )(x_p, w_p, ss_p)

    return out_p[:M, :n_out]


# ----------------------------------------------------------------------------
# pure-JAX reference (faithful port of the PyTorch forward) for validation
# ----------------------------------------------------------------------------
def linear_block_ref(x, weight, bias=None, *, norm_fn='none', acti_fn='none',
                     norm_params=None, eps=1e-5, matmul_dtype=jnp.bfloat16):
    if matmul_dtype is not None:
        y = jnp.dot(x.astype(matmul_dtype), weight.T.astype(matmul_dtype),
                    preferred_element_type=jnp.float32)
    else:
        y = jnp.dot(x, weight.T)
    if norm_fn == 'none':
        if bias is not None:
            y = y + bias
    elif norm_fn == 'batchnorm':
        g = norm_params['gamma']; b = norm_params['beta']
        m = norm_params['running_mean']; v = norm_params['running_var']
        y = (y - m) / jnp.sqrt(v + eps) * g + b
    elif norm_fn == 'instancenorm':
        y = jnp.broadcast_to(norm_params['beta'], y.shape)
    else:
        raise ValueError(norm_fn)
    return _apply_activation(y, acti_fn)


# ----------------------------------------------------------------------------
# self-test
# ----------------------------------------------------------------------------
if __name__ == "__main__":
    key = jax.random.PRNGKey(0)
    ks = jax.random.split(key, 8)

    # LinearBlock(n_in=300, n_out=200) at batch 64 (non-aligned shapes to
    # exercise padding / tiling / the megacore M split).
    M, n_in, n_out = 64, 300, 200
    x = jax.random.normal(ks[0], (M, n_in), jnp.float32)
    weight = 0.1 * jax.random.normal(ks[1], (n_out, n_in), jnp.float32)
    bias = 0.1 * jax.random.normal(ks[2], (n_out,), jnp.float32)
    bn = {
        'gamma': 1.0 + 0.1 * jax.random.normal(ks[3], (n_out,), jnp.float32),
        'beta': 0.1 * jax.random.normal(ks[4], (n_out,), jnp.float32),
        'running_mean': 0.1 * jax.random.normal(ks[5], (n_out,), jnp.float32),
        'running_var': jnp.abs(1.0 + 0.1 * jax.random.normal(ks[6], (n_out,), jnp.float32)),
    }
    inorm = {'beta': 0.1 * jax.random.normal(ks[7], (n_out,), jnp.float32)}

    configs = [
        dict(norm_fn='none',         acti_fn='relu',    bias=bias, norm_params=None,  tiled=False),
        dict(norm_fn='none',         acti_fn='lrelu',   bias=bias, norm_params=None,  tiled=False),
        dict(norm_fn='batchnorm',    acti_fn='tanh',    bias=None, norm_params=bn,    tiled=False),
        dict(norm_fn='batchnorm',    acti_fn='sigmoid', bias=None, norm_params=bn,    tiled=False),
        dict(norm_fn='instancenorm', acti_fn='none',    bias=None, norm_params=inorm, tiled=False),
        # Also exercise the general 3-D tiled path (multi-step K reduction).
        dict(norm_fn='none',         acti_fn='relu',    bias=bias, norm_params=None,  tiled=True),
    ]

    max_err = 0.0
    for cfg in configs:
        params = prepare_linear_block_params(
            weight, cfg['bias'], norm_fn=cfg['norm_fn'], norm_params=cfg['norm_params'])
        out_p = jax.block_until_ready(
            linear_block_forward(x, params, acti_fn=cfg['acti_fn'],
                                 force_tiled=cfg['tiled'],
                                 tk_max=256 if cfg['tiled'] else 512))
        out_r = linear_block_ref(x, weight, cfg['bias'],
                                 norm_fn=cfg['norm_fn'], acti_fn=cfg['acti_fn'],
                                 norm_params=cfg['norm_params'])
        err = float(jnp.max(jnp.abs(out_p.astype(jnp.float32) - out_r)))
        max_err = max(max_err, err)
        assert err < 2e-3, (
            f"max abs error too large for {cfg['norm_fn']}/{cfg['acti_fn']} "
            f"(tiled={cfg['tiled']}): {err}")

    print("KERNEL_OK")
</pallas_src>

<mosaic_0001>
module attributes {stable_mosaic.version = 11 : i64} {
  func.func @_lb_kernel_resident(%arg0: i32, %arg1: memref<32x512xbf16, #tpu.memory_space<vmem>>, %arg2: memref<512x256xbf16, #tpu.memory_space<vmem>>, %arg3: memref<2x256xf32, #tpu.memory_space<vmem>>, %arg4: memref<32x256xf32, #tpu.memory_space<vmem>>) attributes {dimension_semantics = [#tpu.dimension_semantics<parallel>], iteration_bounds = array<i64: 2>, scalar_prefetch = 0 : i64, scratch_operands = 0 : i64, tpu.core_type = #tpu.core_type<tc>, window_params = [{transform_indices = @transform_0, window_bounds = array<i64: 32, 512>}, {pipeline_mode = #tpu.pipeline_mode<synchronous>, transform_indices = @transform_1, window_bounds = array<i64: 512, 256>}, {pipeline_mode = #tpu.pipeline_mode<synchronous>, transform_indices = @transform_2, window_bounds = array<i64: 2, 256>}, {transform_indices = @transform_3, window_bounds = array<i64: 32, 256>}]} {
    %c0 = arith.constant 0 : index
    %c0_0 = arith.constant 0 : index
    %0 = vector.load %arg1[%c0, %c0_0] : memref<32x512xbf16, #tpu.memory_space<vmem>>, vector<32x512xbf16>
    %c0_1 = arith.constant 0 : index
    %c0_2 = arith.constant 0 : index
    %1 = vector.load %arg2[%c0_1, %c0_2] : memref<512x256xbf16, #tpu.memory_space<vmem>>, vector<512x256xbf16>
    %cst = arith.constant dense<0.000000e+00> : vector<32x256xf32>
    %2 = tpu.matmul %0, %1, %cst {dimension_numbers = #tpu.dot_dimension_numbers<[1], [0], [0], [1], [0, 0, 1, 1], [], []>} : vector<32x512xbf16>, vector<512x256xbf16>, vector<32x256xf32> -> vector<32x256xf32>
    %c0_3 = arith.constant 0 : index
    %c0_4 = arith.constant 0 : index
    %3 = vector.load %arg3[%c0_3, %c0_4] : memref<2x256xf32, #tpu.memory_space<vmem>>, vector<1x256xf32>
    %4 = vector.broadcast %3 : vector<1x256xf32> to vector<32x256xf32>
    %5 = arith.mulf %2, %4 : vector<32x256xf32>
    %c1 = arith.constant 1 : index
    %c0_5 = arith.constant 0 : index
    %6 = vector.load %arg3[%c1, %c0_5] : memref<2x256xf32, #tpu.memory_space<vmem>>, vector<1x256xf32>
    %7 = vector.broadcast %6 : vector<1x256xf32> to vector<32x256xf32>
    %8 = arith.addf %5, %7 : vector<32x256xf32>
    %cst_6 = arith.constant 0.000000e+00 : f32
    %9 = vector.broadcast %cst_6 : f32 to vector<32x256xf32>
    %10 = arith.maximumf %8, %9 : vector<32x256xf32>
    %c0_7 = arith.constant 0 : index
    %c0_8 = arith.constant 0 : index
    %11 = vector.load %arg4[%c0_7, %c0_8] : memref<32x256xf32, #tpu.memory_space<vmem>>, vector<32x256xf32>
    tpu.vector_store %arg4[%c0_7, %c0_8], %10 {strides = array<i32>} : memref<32x256xf32, #tpu.memory_space<vmem>>, vector<32x256xf32>,
    return
  }
  func.func @transform_0(%arg0: i32) -> (i32, i32) {
    %c0_i32 = arith.constant 0 : i32
    %c0_i32_0 = arith.constant 0 : i32
    return %arg0, %c0_i32 : i32, i32
  }
  func.func @transform_1(%arg0: i32) -> (i32, i32) {
    %c0_i32 = arith.constant 0 : i32
    %c0_i32_0 = arith.constant 0 : i32
    %c0_i32_1 = arith.constant 0 : i32
    return %c0_i32, %c0_i32_0 : i32, i32
  }
  func.func @transform_2(%arg0: i32) -> (i32, i32) {
    %c0_i32 = arith.constant 0 : i32
    %c0_i32_0 = arith.constant 0 : i32
    %c0_i32_1 = arith.constant 0 : i32
    return %c0_i32, %c0_i32_0 : i32, i32
  }
  func.func @transform_3(%arg0: i32) -> (i32, i32) {
    %c0_i32 = arith.constant 0 : i32
    %c0_i32_0 = arith.constant 0 : i32
    return %arg0, %c0_i32 : i32, i32
  }
}

</mosaic_0001>

<llo_original>
// kernel: tpu_custom_call.1
$region0: #{tpu_custom_call.1}
  #allocation0 [shape = 'u32[]', space=smem, size = 0x4, offset = 0x4, fixed_abs, tag = 'smem constant byte address 0x4 - core index']
  #allocation1 [shape = 'u32[72,128]{1,0:T(1,128)}', space=vmem, size = 0x9000, scoped, tag = 'internal scratch']
  %s0 = inlined_call_operand.hbm [shape: bf16[64,512], index: 0, kind: input, shape index: {}]
  %s1 = inlined_call_operand.hbm [shape: bf16[512,256], index: 1, kind: input, shape index: {}]
  %s2 = inlined_call_operand.hbm [shape: f32[2,256], index: 2, kind: input, shape index: {}]
  %s3 = inlined_call_operand.hbm [shape: f32[64,256], index: 3, kind: output, shape index: {}]
  %s4 = sld [smem:[#allocation0]]
  $region57: #{tpu_custom_call.1} parent=0
    _
  %s6 = ssub.s32 1, %s4
  %s7 = scalar_select 0, %s6, %s4
  $region1: #{tpu_custom_call.1} parent=0
    #allocation2 [shape = 'u8[65536]{0}', space=vmem, size = 0x10000, scoped, tag = 'input window, operand 0']
    #allocation3 [shape = 's32[2]{0}', space=sflag, size = 0x8, scoped, tag = 'scoped memory for tpu_custom_call.1']
    #allocation4 [shape = 's32[2]{0}', space=sflag, size = 0x8, scoped, tag = 'scoped memory for tpu_custom_call.1']
    #allocation5 [shape = 'u8[262144]{0}', space=vmem, size = 0x40000, scoped, tag = 'input window, operand 1, single buffered']
    #allocation6 [shape = 's32[1]{0}', space=sflag, size = 0x4, scoped, tag = 'scoped memory for tpu_custom_call.1']
    #allocation7 [shape = 'u8[2048]{0}', space=vmem, size = 0x800, scoped, tag = 'input window, operand 2, single buffered']
    #allocation8 [shape = 'u8[65536]{0}', space=vmem, size = 0x10000, scoped, tag = 'output window, operand 0']
    %8 = vsyncpa [#allocation3], 0
    %s9 = scalar_lea.sflag [#allocation3], 1
    %10 = vsyncpa %s9, 0
    %11 = vsyncpa [#allocation6], 0
    %12 = vsyncpa [#allocation4], 0
    %s13 = scalar_lea.sflag [#allocation4], 1
    %14 = vsyncpa %s13, 0
    loop: start=0, step=1, limit=4
    $region2: #{tpu_custom_call.1} parent=1 // loop_pre_header
      _
    $region3: #{tpu_custom_call.1} parent=1 // loop_header
      %s16 = sphi 0, %s20
      %p17 = scmp.ge.s32.totalorder %s16, 4
      %s26 = sphi 0, %s28
      %s29 = sphi 0, %s26
      %s30 = sphi 0, %s29
      %s46 = sphi 0, %s30
      %s50 = sphi 0, %s50
      %s52 = sphi 0, %s50
      %s53 = sphi 0, %s52
      %s67 = sphi 0, %s53
      %s71 = sphi 0, %s71
      %s73 = sphi 0, %s71
      %s74 = sphi 0, %s73
      %s88 = sphi 0, %s74
      %s94 = sphi 0, %s96
      %s97 = sphi 0, %s94
      %s98 = sphi 0, %s97
      %s114 = sphi 0, %s98
    $region4: #{tpu_custom_call.1} parent=1 // loop_header_branch
      %19 = sbr.rel (%p17) target = $region8
    $region5: #{tpu_custom_call.1} parent=1 // loop_body
      %s21 = ssub.s32 %s16, 1
      %s22 = ssub.s32 %s16, 2
      %s23 = sadd.s32 %s16, 1
      %s24 = ssub.s32 %s16, %s23
      %p25 = scmp.eq.s32.totalorder %s24, 0
      %s27 = sadd.s32 %s26, 1
      %s28 = scalar_select %p25, %s26, %s27
      %p31 = pneg %p25
      %p32 = scmp.eq.s32.totalorder %s16, 1
      %p33 = por %p31, %p32
      %p34 = scmp.ne.s32.totalorder %s26, %s29
      %p35 = scmp.eq.s32.totalorder %s16, 0
      %p36 = por %p34, %p35
      %p37 = scmp.ne.s32.totalorder %s26, %s29
      %p38 = scmp.eq.s32.totalorder %s21, 1
      %p39 = por %p37, %p38
      %p40 = scmp.ne.s32.totalorder %s29, %s30
      %p41 = scmp.eq.s32.totalorder %s21, 0
      %p42 = por %p40, %p41
      %p43 = scmp.ne.s32.totalorder %s29, %s30
      %p44 = scmp.eq.s32.totalorder %s22, 1
      %p45 = por %p43, %p44
      %p47 = scmp.ne.s32.totalorder %s30, %s46
      %p48 = scmp.eq.s32.totalorder %s22, 0
      %p49 = por %p47, %p48
      %s51 = sadd.s32 %s50, 1
      %p54 = scmp.eq.s32.totalorder %s16, 1
      %p55 = scmp.ne.s32.totalorder %s50, %s52
      %p56 = scmp.eq.s32.totalorder %s16, 0
      %p57 = por %p55, %p56
      %p58 = scmp.ne.s32.totalorder %s50, %s52
      %p59 = scmp.eq.s32.totalorder %s21, 1
      %p60 = por %p58, %p59
      %p61 = scmp.ne.s32.totalorder %s52, %s53
      %p62 = scmp.eq.s32.totalorder %s21, 0
      %p63 = por %p61, %p62
      %p64 = scmp.ne.s32.totalorder %s52, %s53
      %p65 = scmp.eq.s32.totalorder %s22, 1
      %p66 = por %p64, %p65
      %p68 = scmp.ne.s32.totalorder %s53, %s67
      %p69 = scmp.eq.s32.totalorder %s22, 0
      %p70 = por %p68, %p69
      %s72 = sadd.s32 %s71, 1
      %p75 = scmp.eq.s32.totalorder %s16, 1
      %p76 = scmp.ne.s32.totalorder %s71, %s73
      %p77 = scmp.eq.s32.totalorder %s16, 0
      %p78 = por %p76, %p77
      %p79 = scmp.ne.s32.totalorder %s71, %s73
      %p80 = scmp.eq.s32.totalorder %s21, 1
      %p81 = por %p79, %p80
      %p82 = scmp.ne.s32.totalorder %s73, %s74
      %p83 = scmp.eq.s32.totalorder %s21, 0
      %p84 = por %p82, %p83
      %p85 = scmp.ne.s32.totalorder %s73, %s74
      %p86 = scmp.eq.s32.totalorder %s22, 1
      %p87 = por %p85, %p86
      %p89 = scmp.ne.s32.totalorder %s74, %s88
      %p90 = scmp.eq.s32.totalorder %s22, 0
      %p91 = por %p89, %p90
      %s92 = ssub.s32 %s16, %s23
      %p93 = scmp.eq.s32.totalorder %s92, 0
      %s95 = sadd.s32 %s94, 1
      %s96 = scalar_select %p93, %s94, %s95
      %p99 = pneg %p93
      %p100 = scmp.eq.s32.totalorder %s16, 1
      %p101 = por %p99, %p100
      %p102 = scmp.ne.s32.totalorder %s94, %s97
      %p103 = scmp.eq.s32.totalorder %s16, 0
      %p104 = por %p102, %p103
      %p105 = scmp.ne.s32.totalorder %s94, %s97
      %p106 = scmp.eq.s32.totalorder %s21, 1
      %p107 = por %p105, %p106
      %p108 = scmp.ne.s32.totalorder %s97, %s98
      %p109 = scmp.eq.s32.totalorder %s21, 0
      %p110 = por %p108, %p109
      %p111 = scmp.ne.s32.totalorder %s97, %s98
      %p112 = scmp.eq.s32.totalorder %s22, 1
      %p113 = por %p111, %p112
      %p115 = scmp.ne.s32.totalorder %s98, %s114
      %p116 = scmp.eq.s32.totalorder %s22, 0
      %p117 = por %p115, %p116
      %p118 = scmp.le.s32.totalorder 1, %s16
      %p119 = scmp.lt.s32.totalorder %s16, 3
      %p120 = pnand %p118, %p119
      %p121 = pneg %p120
      // Predicated region
      $region9: #{tpu_custom_call.1} parent=5 // pred_check
        _
      $region10: #{tpu_custom_call.1} parent=5 // pred_check_branch
        %123 = sbr.rel (%p120) target = $region12
      $region11: #{tpu_custom_call.1} parent=5 // pred_region
        %s124 = ssub.s32 %s16, 1
        // Predicated region
        $region13: #{tpu_custom_call.1} parent=11 // pred_check
          %p125 = pneg %p63
        $region14: #{tpu_custom_call.1} parent=11 // pred_check_branch
          %127 = sbr.rel (%p125) target = $region16
        $region15: #{tpu_custom_call.1} parent=11 // pred_region
          %129 = vsyncadd [#allocation6], 0
          %s130 = sshll.u32 %s1, 4
          %s131 = int_to_ptr.hbm [resolvable:$true] %s130
          %s132 = sshll.u32 [#allocation5], 4
          %s133 = int_to_ptr.vmem [resolvable:$true] %s132
          %138 = dma.hbm_to_vmem [thread:$0]  %s131, 8192, %s133, [#allocation6], 128, 128, 8
        $region16: #{tpu_custom_call.1} parent=11 // pred_fallthru
          _
        // Predicated region
        $region17: #{tpu_custom_call.1} parent=11 // pred_check
          %p139 = pneg %p84
        $region18: #{tpu_custom_call.1} parent=11 // pred_check_branch
          %141 = sbr.rel (%p139) target = $region20
        $region19: #{tpu_custom_call.1} parent=11 // pred_region
          %143 = vsyncadd [#allocation6], 0
          %s145 = sshll.u32 %s2, 4
          %s146 = int_to_ptr.hbm [resolvable:$true] %s145
          %s147 = sshll.u32 [#allocation7], 4
          %s148 = int_to_ptr.vmem [resolvable:$true] %s147
          %150 = dma.hbm_to_vmem [thread:$0]  %s146, 64, %s148, [#allocation6]
        $region20: #{tpu_custom_call.1} parent=11 // pred_fallthru
          _
      $region12: #{tpu_custom_call.1} parent=5 // pred_fallthru
        _
      %p151 = scmp.lt.s32.totalorder %s16, 2
      // Predicated region
      $region21: #{tpu_custom_call.1} parent=5 // pred_check
        %p152 = pneg %p151
      $region22: #{tpu_custom_call.1} parent=5 // pred_check_branch
        %154 = sbr.rel (%p152) target = $region24
      $region23: #{tpu_custom_call.1} parent=5 // pred_region
        // Predicated region
        $region25: #{tpu_custom_call.1} parent=23 // pred_check
          %p155 = pneg %p36
        $region26: #{tpu_custom_call.1} parent=23 // pred_check_branch
          %157 = sbr.rel (%p155) target = $region28
        $region27: #{tpu_custom_call.1} parent=23 // pred_region
          %s158 = sand.u32 %s26, 1
          %s159 = scalar_lea.sflag [#allocation3], %s158
          %s160 = sand.u32 %s26, 1
          %s161 = smul.addr %s160, 64
          %s162 = scalar_lea.vmem [#allocation2], %s161
          %s163 = smul.u32 4, %s16
          %165 = vsyncadd %s159, 0
          %s166 = smul.addr %s163, 4
          %s167 = smul.addr %s166, 4
          %s168 = scalar_lea.hbm %s0, %s167
          %s169 = sshll.u32 %s168, 4
          %s170 = int_to_ptr.hbm [resolvable:$true] %s169
          %s171 = sshll.u32 %s162, 4
          %s172 = int_to_ptr.vmem [resolvable:$true] %s171
          %177 = dma.hbm_to_vmem [thread:$0]  %s170, 1024, %s172, %s159, 256, 256, 16
        $region28: #{tpu_custom_call.1} parent=23 // pred_fallthru
          _
      $region24: #{tpu_custom_call.1} parent=5 // pred_fallthru
        _
      %p178 = scmp.le.s32.totalorder 1, %s16
      %p179 = scmp.lt.s32.totalorder %s16, 3
      %p180 = pnand %p178, %p179
      %p181 = pneg %p180
      // Predicated region
      $region29: #{tpu_custom_call.1} parent=5 // pred_check
        _
      $region30: #{tpu_custom_call.1} parent=5 // pred_check_branch
        %183 = sbr.rel (%p180) target = $region32
      $region31: #{tpu_custom_call.1} parent=5 // pred_region
        %s184 = ssub.s32 %s16, 1
        %s185 = sand.u32 %s29, 1
        %s186 = scalar_lea.sflag [#allocation3], %s185
        %s187 = sand.u32 %s29, 1
        %s188 = smul.addr %s187, 64
        %s189 = scalar_lea.vmem [#allocation2], %s188
        // Predicated region
        $region33: #{tpu_custom_call.1} parent=31 // pred_check
          %p190 = pneg %p42
        $region34: #{tpu_custom_call.1} parent=31 // pred_check_branch
          %192 = sbr.rel (%p190) target = $region36
        $region35: #{tpu_custom_call.1} parent=31 // pred_region
          %194 = dma.done %s186, 1024
        $region36: #{tpu_custom_call.1} parent=31 // pred_fallthru
          _
        // Predicated region
        $region37: #{tpu_custom_call.1} parent=31 // pred_check
          %p195 = pneg %p63
        $region38: #{tpu_custom_call.1} parent=31 // pred_check_branch
          %197 = sbr.rel (%p195) target = $region40
        $region39: #{tpu_custom_call.1} parent=31 // pred_region
          %199 = dma.done [#allocation6], 8192
        $region40: #{tpu_custom_call.1} parent=31 // pred_fallthru
          _
        // Predicated region
        $region41: #{tpu_custom_call.1} parent=31 // pred_check
          %p200 = pneg %p84
        $region42: #{tpu_custom_call.1} parent=31 // pred_check_branch
          %202 = sbr.rel (%p200) target = $region44
        $region43: #{tpu_custom_call.1} parent=31 // pred_region
          %204 = dma.done [#allocation6], 64
        $region44: #{tpu_custom_call.1} parent=31 // pred_fallthru
          _
        %s205 = sand.u32 %s29, 1
        %s206 = scalar_lea.sflag [#allocation3], %s205
        %s207 = sand.u32 %s29, 1
        %s208 = smul.addr %s207, 64
        %s209 = scalar_lea.vmem [#allocation2], %s208
        %p210 = pneg %p42
        %p211 = pneg %p39
        %p212 = pneg %p63
        %p213 = pneg %p60
        %p214 = pneg %p84
        %p215 = pneg %p81
        %p216 = pneg %p110
        %p217 = pneg %p107
        %s218 = sand.u32 %s97, 1
        %s219 = scalar_lea.sflag [#allocation4], %s218
        %s220 = sand.u32 %s97, 1
        %s221 = smul.addr %s220, 64
        %s222 = scalar_lea.vmem [#allocation8], %s221
        %s223 = smul.u32 4, %s21
        %s224 = smul.u32 4, %s21
        %v225 = vld [vmem:[%s189] sm:$0xff]
        %v226 = vld [vmem:[%s189 + $0x8] sm:$0xff]
        %v227 = vld [vmem:[%s189 + $0x10] sm:$0xff]
        %v228 = vld [vmem:[%s189 + $0x18] sm:$0xff]
        %v229 = vld [vmem:[%s189 + $0x20] sm:$0xff]
        %v230 = vld [vmem:[%s189 + $0x28] sm:$0xff]
        %v231 = vld [vmem:[%s189 + $0x30] sm:$0xff]
        %v232 = vld [vmem:[%s189 + $0x38] sm:$0xff]
        %v233 = vld [vmem:[#allocation5] sm:$0xff]
        %v234 = vld [vmem:[#allocation5 + $0x8] sm:$0xff]
        %v235 = vld [vmem:[#allocation5 + $0x10] sm:$0xff]
        %v236 = vld [vmem:[#allocation5 + $0x18] sm:$0xff]
        %v237 = vld [vmem:[#allocation5 + $0x20] sm:$0xff]
        %v238 = vld [vmem:[#allocation5 + $0x28] sm:$0xff]
        %v239 = vld [vmem:[#allocation5 + $0x30] sm:$0xff]
        %v240 = vld [vmem:[#allocation5 + $0x38] sm:$0xff]
        %v241 = vld [vmem:[#allocation5 + $0x40] sm:$0xff]
        %v242 = vld [vmem:[#allocation5 + $0x48] sm:$0xff]
        %v243 = vld [vmem:[#allocation5 + $0x50] sm:$0xff]
        %v244 = vld [vmem:[#allocation5 + $0x58] sm:$0xff]
        %v245 = vld [vmem:[#allocation5 + $0x60] sm:$0xff]
        %v246 = vld [vmem:[#allocation5 + $0x68] sm:$0xff]
        %v247 = vld [vmem:[#allocation5 + $0x70] sm:$0xff]
        %v248 = vld [vmem:[#allocation5 + $0x78] sm:$0xff]
        %v249 = vld [vmem:[#allocation5 + $0x80] sm:$0xff]
        %v250 = vld [vmem:[#allocation5 + $0x88] sm:$0xff]
        %v251 = vld [vmem:[#allocation5 + $0x90] sm:$0xff]
        %v252 = vld [vmem:[#allocation5 + $0x98] sm:$0xff]
        %v253 = vld [vmem:[#allocation5 + $0xa0] sm:$0xff]
        %v254 = vld [vmem:[#allocation5 + $0xa8] sm:$0xff]
        %v255 = vld [vmem:[#allocation5 + $0xb0] sm:$0xff]
        %v256 = vld [vmem:[#allocation5 + $0xb8] sm:$0xff]
        %v257 = vld [vmem:[#allocation5 + $0xc0] sm:$0xff]
        %v258 = vld [vmem:[#allocation5 + $0xc8] sm:$0xff]
        %v259 = vld [vmem:[#allocation5 + $0xd0] sm:$0xff]
        %v260 = vld [vmem:[#allocation5 + $0xd8] sm:$0xff]
        %v261 = vld [vmem:[#allocation5 + $0xe0] sm:$0xff]
        %v262 = vld [vmem:[#allocation5 + $0xe8] sm:$0xff]
        %v263 = vld [vmem:[#allocation5 + $0xf0] sm:$0xff]
        %v264 = vld [vmem:[#allocation5 + $0xf8] sm:$0xff]
        %v265 = vld [vmem:[#allocation5 + $0x100] sm:$0xff]
        %v266 = vld [vmem:[#allocation5 + $0x108] sm:$0xff]
        %v267 = vld [vmem:[#allocation5 + $0x110] sm:$0xff]
        %v268 = vld [vmem:[#allocation5 + $0x118] sm:$0xff]
        %v269 = vld [vmem:[#allocation5 + $0x120] sm:$0xff]
        %v270 = vld [vmem:[#allocation5 + $0x128] sm:$0xff]
        %v271 = vld [vmem:[#allocation5 + $0x130] sm:$0xff]
        %v272 = vld [vmem:[#allocation5 + $0x138] sm:$0xff]
        %v273 = vld [vmem:[#allocation5 + $0x140] sm:$0xff]
        %v274 = vld [vmem:[#allocation5 + $0x148] sm:$0xff]
        %v275 = vld [vmem:[#allocation5 + $0x150] sm:$0xff]
        %v276 = vld [vmem:[#allocation5 + $0x158] sm:$0xff]
        %v277 = vld [vmem:[#allocation5 + $0x160] sm:$0xff]
        %v278 = vld [vmem:[#allocation5 + $0x168] sm:$0xff]
        %v279 = vld [vmem:[#allocation5 + $0x170] sm:$0xff]
        %v280 = vld [vmem:[#allocation5 + $0x178] sm:$0xff]
        %v281 = vld [vmem:[#allocation5 + $0x180] sm:$0xff]
        %v282 = vld [vmem:[#allocation5 + $0x188] sm:$0xff]
        %v283 = vld [vmem:[#allocation5 + $0x190] sm:$0xff]
        %v284 = vld [vmem:[#allocation5 + $0x198] sm:$0xff]
        %v285 = vld [vmem:[#allocation5 + $0x1a0] sm:$0xff]
        %v286 = vld [vmem:[#allocation5 + $0x1a8] sm:$0xff]
        %v287 = vld [vmem:[#allocation5 + $0x1b0] sm:$0xff]
        %v288 = vld [vmem:[#allocation5 + $0x1b8] sm:$0xff]
        %v289 = vld [vmem:[#allocation5 + $0x1c0] sm:$0xff]
        %v290 = vld [vmem:[#allocation5 + $0x1c8] sm:$0xff]
        %v291 = vld [vmem:[#allocation5 + $0x1d0] sm:$0xff]
        %v292 = vld [vmem:[#allocation5 + $0x1d8] sm:$0xff]
        %v293 = vld [vmem:[#allocation5 + $0x1e0] sm:$0xff]
        %v294 = vld [vmem:[#allocation5 + $0x1e8] sm:$0xff]
        %v295 = vld [vmem:[#allocation5 + $0x1f0] sm:$0xff]
        %v296 = vld [vmem:[#allocation5 + $0x1f8] sm:$0xff]
        %v305 = vunpack.c.l.b16 %v225
        %v306 = vunpack.c.h.b16 %v225
        %v307 = vunpack.c.l.b16 %v226
        %v308 = vunpack.c.h.b16 %v226
        %v309 = vunpack.c.l.b16 %v227
        %v310 = vunpack.c.h.b16 %v227
        %v311 = vunpack.c.l.b16 %v228
        %v312 = vunpack.c.h.b16 %v228
        %v313 = vunpack.c.l.b16 %v229
        %v314 = vunpack.c.h.b16 %v229
        %v315 = vunpack.c.l.b16 %v230
        %v316 = vunpack.c.h.b16 %v230
        %v317 = vunpack.c.l.b16 %v231
        %v318 = vunpack.c.h.b16 %v231
        %v319 = vunpack.c.l.b16 %v232
        %v320 = vunpack.c.h.b16 %v232
        %v321 = vpack.c.b16 %v309, %v305
        %v322 = vpack.c.b16 %v310, %v306
        %v323 = vpack.c.b16 %v311, %v307
        %v324 = vpack.c.b16 %v312, %v308
        %v325 = vpack.c.b16 %v317, %v313
        %v326 = vpack.c.b16 %v318, %v314
        %v327 = vpack.c.b16 %v319, %v315
        %v328 = vpack.c.b16 %v320, %v316
        %v401 = vunpack.c.l.b16 %v233
        %v402 = vunpack.c.h.b16 %v233
        %v403 = vunpack.c.l.b16 %v234
        %v404 = vunpack.c.h.b16 %v234
        %v405 = vunpack.c.l.b16 %v235
        %v406 = vunpack.c.h.b16 %v235
        %v407 = vunpack.c.l.b16 %v236
        %v408 = vunpack.c.h.b16 %v236
        %v409 = vunpack.c.l.b16 %v237
        %v410 = vunpack.c.h.b16 %v237
        %v411 = vunpack.c.l.b16 %v238
        %v412 = vunpack.c.h.b16 %v238
        %v413 = vunpack.c.l.b16 %v239
        %v414 = vunpack.c.h.b16 %v239
        %v415 = vunpack.c.l.b16 %v240
        %v416 = vunpack.c.h.b16 %v240
        %v417 = vunpack.c.l.b16 %v241
        %v418 = vunpack.c.h.b16 %v241
        %v419 = vunpack.c.l.b16 %v242
        %v420 = vunpack.c.h.b16 %v242
        %v421 = vunpack.c.l.b16 %v243
        %v422 = vunpack.c.h.b16 %v243
        %v423 = vunpack.c.l.b16 %v244
        %v424 = vunpack.c.h.b16 %v244
        %v425 = vunpack.c.l.b16 %v245
        %v426 = vunpack.c.h.b16 %v245
        %v427 = vunpack.c.l.b16 %v246
        %v428 = vunpack.c.h.b16 %v246
        %v429 = vunpack.c.l.b16 %v247
        %v430 = vunpack.c.h.b16 %v247
        %v431 = vunpack.c.l.b16 %v248
        %v432 = vunpack.c.h.b16 %v248
        %v433 = vunpack.c.l.b16 %v249
        %v434 = vunpack.c.h.b16 %v249
        %v435 = vunpack.c.l.b16 %v250
        %v436 = vunpack.c.h.b16 %v250
        %v437 = vunpack.c.l.b16 %v251
        %v438 = vunpack.c.h.b16 %v251
        %v439 = vunpack.c.l.b16 %v252
        %v440 = vunpack.c.h.b16 %v252
        %v441 = vunpack.c.l.b16 %v253
        %v442 = vunpack.c.h.b16 %v253
        %v443 = vunpack.c.l.b16 %v254
        %v444 = vunpack.c.h.b16 %v254
        %v445 = vunpack.c.l.b16 %v255
        %v446 = vunpack.c.h.b16 %v255
        %v447 = vunpack.c.l.b16 %v256
        %v448 = vunpack.c.h.b16 %v256
        %v449 = vunpack.c.l.b16 %v257
        %v450 = vunpack.c.h.b16 %v257
        %v451 = vunpack.c.l.b16 %v258
        %v452 = vunpack.c.h.b16 %v258
        %v453 = vunpack.c.l.b16 %v259
        %v454 = vunpack.c.h.b16 %v259
        %v455 = vunpack.c.l.b16 %v260
        %v456 = vunpack.c.h.b16 %v260
        %v457 = vunpack.c.l.b16 %v261
        %v458 = vunpack.c.h.b16 %v261
        %v459 = vunpack.c.l.b16 %v262
        %v460 = vunpack.c.h.b16 %v262
        %v461 = vunpack.c.l.b16 %v263
        %v462 = vunpack.c.h.b16 %v263
        %v463 = vunpack.c.l.b16 %v264
        %v464 = vunpack.c.h.b16 %v264
        %v465 = vunpack.c.l.b16 %v265
        %v466 = vunpack.c.h.b16 %v265
        %v467 = vunpack.c.l.b16 %v266
        %v468 = vunpack.c.h.b16 %v266
        %v469 = vunpack.c.l.b16 %v267
        %v470 = vunpack.c.h.b16 %v267
        %v471 = vunpack.c.l.b16 %v268
        %v472 = vunpack.c.h.b16 %v268
        %v473 = vunpack.c.l.b16 %v269
        %v474 = vunpack.c.h.b16 %v269
        %v475 = vunpack.c.l.b16 %v270
        %v476 = vunpack.c.h.b16 %v270
        %v477 = vunpack.c.l.b16 %v271
        %v478 = vunpack.c.h.b16 %v271
        %v479 = vunpack.c.l.b16 %v272
        %v480 = vunpack.c.h.b16 %v272
        %v481 = vunpack.c.l.b16 %v273
        %v482 = vunpack.c.h.b16 %v273
        %v483 = vunpack.c.l.b16 %v274
        %v484 = vunpack.c.h.b16 %v274
        %v485 = vunpack.c.l.b16 %v275
        %v486 = vunpack.c.h.b16 %v275
        %v487 = vunpack.c.l.b16 %v276
        %v488 = vunpack.c.h.b16 %v276
        %v489 = vunpack.c.l.b16 %v277
        %v490 = vunpack.c.h.b16 %v277
        %v491 = vunpack.c.l.b16 %v278
        %v492 = vunpack.c.h.b16 %v278
        %v493 = vunpack.c.l.b16 %v279
        %v494 = vunpack.c.h.b16 %v279
        %v495 = vunpack.c.l.b16 %v280
        %v496 = vunpack.c.h.b16 %v280
        %v497 = vunpack.c.l.b16 %v281
        %v498 = vunpack.c.h.b16 %v281
        %v499 = vunpack.c.l.b16 %v282
        %v500 = vunpack.c.h.b16 %v282
        %v501 = vunpack.c.l.b16 %v283
        %v502 = vunpack.c.h.b16 %v283
        %v503 = vunpack.c.l.b16 %v284
        %v504 = vunpack.c.h.b16 %v284
        %v505 = vunpack.c.l.b16 %v285
        %v506 = vunpack.c.h.b16 %v285
        %v507 = vunpack.c.l.b16 %v286
        %v508 = vunpack.c.h.b16 %v286
        %v509 = vunpack.c.l.b16 %v287
        %v510 = vunpack.c.h.b16 %v287
        %v511 = vunpack.c.l.b16 %v288
        %v512 = vunpack.c.h.b16 %v288
        %v513 = vunpack.c.l.b16 %v289
        %v514 = vunpack.c.h.b16 %v289
        %v515 = vunpack.c.l.b16 %v290
        %v516 = vunpack.c.h.b16 %v290
        %v517 = vunpack.c.l.b16 %v291
        %v518 = vunpack.c.h.b16 %v291
        %v519 = vunpack.c.l.b16 %v292
        %v520 = vunpack.c.h.b16 %v292
        %v521 = vunpack.c.l.b16 %v293
        %v522 = vunpack.c.h.b16 %v293
        %v523 = vunpack.c.l.b16 %v294
        %v524 = vunpack.c.h.b16 %v294
        %v525 = vunpack.c.l.b16 %v295
        %v526 = vunpack.c.h.b16 %v295
        %v527 = vunpack.c.l.b16 %v296
        %v528 = vunpack.c.h.b16 %v296
        %v529 = vpack.c.b16 %v403, %v401
        %v530 = vpack.c.b16 %v404, %v402
        %v531 = vpack.c.b16 %v407, %v405
        %v532 = vpack.c.b16 %v408, %v406
        %v533 = vpack.c.b16 %v411, %v409
        %v534 = vpack.c.b16 %v412, %v410
        %v535 = vpack.c.b16 %v415, %v413
        %v536 = vpack.c.b16 %v416, %v414
        %v537 = vpack.c.b16 %v419, %v417
        %v538 = vpack.c.b16 %v420, %v418
        %v539 = vpack.c.b16 %v423, %v421
        %v540 = vpack.c.b16 %v424, %v422
        %v541 = vpack.c.b16 %v427, %v425
        %v542 = vpack.c.b16 %v428, %v426
        %v543 = vpack.c.b16 %v431, %v429
        %v544 = vpack.c.b16 %v432, %v430
        %v545 = vpack.c.b16 %v435, %v433
        %v546 = vpack.c.b16 %v436, %v434
        %v547 = vpack.c.b16 %v439, %v437
        %v548 = vpack.c.b16 %v440, %v438
        %v549 = vpack.c.b16 %v443, %v441
        %v550 = vpack.c.b16 %v444, %v442
        %v551 = vpack.c.b16 %v447, %v445
        %v552 = vpack.c.b16 %v448, %v446
        %v553 = vpack.c.b16 %v451, %v449
        %v554 = vpack.c.b16 %v452, %v450
        %v555 = vpack.c.b16 %v455, %v453
        %v556 = vpack.c.b16 %v456, %v454
        %v557 = vpack.c.b16 %v459, %v457
        %v558 = vpack.c.b16 %v460, %v458
        %v559 = vpack.c.b16 %v463, %v461
        %v560 = vpack.c.b16 %v464, %v462
        %v561 = vpack.c.b16 %v467, %v465
        %v562 = vpack.c.b16 %v468, %v466
        %v563 = vpack.c.b16 %v471, %v469
        %v564 = vpack.c.b16 %v472, %v470
        %v565 = vpack.c.b16 %v475, %v473
        %v566 = vpack.c.b16 %v476, %v474
        %v567 = vpack.c.b16 %v479, %v477
        %v568 = vpack.c.b16 %v480, %v478
        %v569 = vpack.c.b16 %v483, %v481
        %v570 = vpack.c.b16 %v484, %v482
        %v571 = vpack.c.b16 %v487, %v485
        %v572 = vpack.c.b16 %v488, %v486
        %v573 = vpack.c.b16 %v491, %v489
        %v574 = vpack.c.b16 %v492, %v490
        %v575 = vpack.c.b16 %v495, %v493
        %v576 = vpack.c.b16 %v496, %v494
        %v577 = vpack.c.b16 %v499, %v497
        %v578 = vpack.c.b16 %v500, %v498
        %v579 = vpack.c.b16 %v503, %v501
        %v580 = vpack.c.b16 %v504, %v502
        %v581 = vpack.c.b16 %v507, %v505
        %v582 = vpack.c.b16 %v508, %v506
        %v583 = vpack.c.b16 %v511, %v509
        %v584 = vpack.c.b16 %v512, %v510
        %v585 = vpack.c.b16 %v515, %v513
        %v586 = vpack.c.b16 %v516, %v514
        %v587 = vpack.c.b16 %v519, %v517
        %v588 = vpack.c.b16 %v520, %v518
        %v589 = vpack.c.b16 %v523, %v521
        %v590 = vpack.c.b16 %v524, %v522
        %v591 = vpack.c.b16 %v527, %v525
        %v592 = vpack.c.b16 %v528, %v526
        %657 = vmatpush.bf16.msra.mxu0 %v543
        %658 = vmatpush.bf16.msra.mxu0 %v541
        %659 = vmatpush.bf16.msra.mxu0 %v539
        %660 = vmatpush.bf16.msra.mxu0 %v537
        %661 = vmatpush.bf16.msra.mxu0 %v535
        %662 = vmatpush.bf16.msra.mxu0 %v533
        %663 = vmatpush.bf16.msra.mxu0 %v531
        %664 = vmatpush.bf16.msra.mxu0 %v529
        %665 = vmatmul.bf16.gmra.mxu0 %v321
        %v666 = vpop.f32.mrf.mxu0
        %v667 = vadd.f32 0.0, %v666
        %v668 = vpop.f32.mrf.mxu0
        %v669 = vadd.f32 0.0, %v668
        %670 = vmatmul.bf16.gmra.mxu0 %v325
        %v671 = vpop.f32.mrf.mxu0
        %v672 = vadd.f32 0.0, %v671
        %v673 = vpop.f32.mrf.mxu0
        %v674 = vadd.f32 0.0, %v673
        %675 = vdwg.mxu0
        %676 = vmatpush.bf16.msra.mxu0 %v559
        %677 = vmatpush.bf16.msra.mxu0 %v557
        %678 = vmatpush.bf16.msra.mxu0 %v555
        %679 = vmatpush.bf16.msra.mxu0 %v553
        %680 = vmatpush.bf16.msra.mxu0 %v551
        %681 = vmatpush.bf16.msra.mxu0 %v549
        %682 = vmatpush.bf16.msra.mxu0 %v547
        %683 = vmatpush.bf16.msra.mxu0 %v545
        %684 = vmatmul.bf16.gmra.mxu0 %v322
        %v685 = vpop.f32.mrf.mxu0
        %v686 = vadd.f32 %v667, %v685
        %v687 = vpop.f32.mrf.mxu0
        %v688 = vadd.f32 %v669, %v687
        %689 = vmatmul.bf16.gmra.mxu0 %v326
        %v690 = vpop.f32.mrf.mxu0
        %v691 = vadd.f32 %v672, %v690
        %v692 = vpop.f32.mrf.mxu0
        %v693 = vadd.f32 %v674, %v692
        %694 = vdwg.mxu0
        %695 = vmatpush.bf16.msra.mxu0 %v575
        %696 = vmatpush.bf16.msra.mxu0 %v573
        %697 = vmatpush.bf16.msra.mxu0 %v571
        %698 = vmatpush.bf16.msra.mxu0 %v569
        %699 = vmatpush.bf16.msra.mxu0 %v567
        %700 = vmatpush.bf16.msra.mxu0 %v565
        %701 = vmatpush.bf16.msra.mxu0 %v563
        %702 = vmatpush.bf16.msra.mxu0 %v561
        %703 = vmatmul.bf16.gmra.mxu0 %v323
        %v704 = vpop.f32.mrf.mxu0
        %v705 = vadd.f32 %v686, %v704
        %v706 = vpop.f32.mrf.mxu0
        %v707 = vadd.f32 %v688, %v706
        %708 = vmatmul.bf16.gmra.mxu0 %v327
        %v709 = vpop.f32.mrf.mxu0
        %v710 = vadd.f32 %v691, %v709
        %v711 = vpop.f32.mrf.mxu0
        %v712 = vadd.f32 %v693, %v711
        %713 = vdwg.mxu0
        %714 = vmatpush.bf16.msra.mxu0 %v591
        %715 = vmatpush.bf16.msra.mxu0 %v589
        %716 = vmatpush.bf16.msra.mxu0 %v587
        %717 = vmatpush.bf16.msra.mxu0 %v585
        %718 = vmatpush.bf16.msra.mxu0 %v583
        %719 = vmatpush.bf16.msra.mxu0 %v581
        %720 = vmatpush.bf16.msra.mxu0 %v579
        %721 = vmatpush.bf16.msra.mxu0 %v577
        %722 = vmatmul.bf16.gmra.mxu0 %v324
        %v723 = vpop.f32.mrf.mxu0
        %v724 = vadd.f32 %v705, %v723
        %v725 = vpop.f32.mrf.mxu0
        %v726 = vadd.f32 %v707, %v725
        %727 = vmatmul.bf16.gmra.mxu0 %v328
        %v728 = vpop.f32.mrf.mxu0
        %v729 = vadd.f32 %v710, %v728
        %v730 = vpop.f32.mrf.mxu0
        %v731 = vadd.f32 %v712, %v730
        %732 = vdwg.mxu0
        %733 = vmatpush.bf16.msra.mxu0 %v544
        %734 = vmatpush.bf16.msra.mxu0 %v542
        %735 = vmatpush.bf16.msra.mxu0 %v540
        %736 = vmatpush.bf16.msra.mxu0 %v538
        %737 = vmatpush.bf16.msra.mxu0 %v536
        %738 = vmatpush.bf16.msra.mxu0 %v534
        %739 = vmatpush.bf16.msra.mxu0 %v532
        %740 = vmatpush.bf16.msra.mxu0 %v530
        %741 = vmatmul.bf16.gmra.mxu0 %v321
        %v742 = vpop.f32.mrf.mxu0
        %v743 = vadd.f32 0.0, %v742
        %v744 = vpop.f32.mrf.mxu0
        %v745 = vadd.f32 0.0, %v744
        %746 = vmatmul.bf16.gmra.mxu0 %v325
        %v747 = vpop.f32.mrf.mxu0
        %v748 = vadd.f32 0.0, %v747
        %v749 = vpop.f32.mrf.mxu0
        %v750 = vadd.f32 0.0, %v749
        %751 = vdwg.mxu0
        %752 = vmatpush.bf16.msra.mxu0 %v560
        %753 = vmatpush.bf16.msra.mxu0 %v558
        %754 = vmatpush.bf16.msra.mxu0 %v556
        %755 = vmatpush.bf16.msra.mxu0 %v554
        %756 = vmatpush.bf16.msra.mxu0 %v552
        %757 = vmatpush.bf16.msra.mxu0 %v550
        %758 = vmatpush.bf16.msra.mxu0 %v548
        %759 = vmatpush.bf16.msra.mxu0 %v546
        %760 = vmatmul.bf16.gmra.mxu0 %v322
        %v761 = vpop.f32.mrf.mxu0
        %v762 = vadd.f32 %v743, %v761
        %v763 = vpop.f32.mrf.mxu0
        %v764 = vadd.f32 %v745, %v763
        %765 = vmatmul.bf16.gmra.mxu0 %v326
        %v766 = vpop.f32.mrf.mxu0
        %v767 = vadd.f32 %v748, %v766
        %v768 = vpop.f32.mrf.mxu0
        %v769 = vadd.f32 %v750, %v768
        %770 = vdwg.mxu0
        %771 = vmatpush.bf16.msra.mxu0 %v576
        %772 = vmatpush.bf16.msra.mxu0 %v574
        %773 = vmatpush.bf16.msra.mxu0 %v572
        %774 = vmatpush.bf16.msra.mxu0 %v570
        %775 = vmatpush.bf16.msra.mxu0 %v568
        %776 = vmatpush.bf16.msra.mxu0 %v566
        %777 = vmatpush.bf16.msra.mxu0 %v564
        %778 = vmatpush.bf16.msra.mxu0 %v562
        %779 = vmatmul.bf16.gmra.mxu0 %v323
        %v780 = vpop.f32.mrf.mxu0
        %v781 = vadd.f32 %v762, %v780
        %v782 = vpop.f32.mrf.mxu0
        %v783 = vadd.f32 %v764, %v782
        %784 = vmatmul.bf16.gmra.mxu0 %v327
        %v785 = vpop.f32.mrf.mxu0
        %v786 = vadd.f32 %v767, %v785
        %v787 = vpop.f32.mrf.mxu0
        %v788 = vadd.f32 %v769, %v787
        %789 = vdwg.mxu0
        %790 = vmatpush.bf16.msra.mxu0 %v592
        %791 = vmatpush.bf16.msra.mxu0 %v590
        %792 = vmatpush.bf16.msra.mxu0 %v588
        %793 = vmatpush.bf16.msra.mxu0 %v586
        %794 = vmatpush.bf16.msra.mxu0 %v584
        %795 = vmatpush.bf16.msra.mxu0 %v582
        %796 = vmatpush.bf16.msra.mxu0 %v580
        %797 = vmatpush.bf16.msra.mxu0 %v578
        %798 = vmatmul.bf16.gmra.mxu0 %v324
        %v799 = vpop.f32.mrf.mxu0
        %v800 = vadd.f32 %v781, %v799
        %v801 = vpop.f32.mrf.mxu0
        %v802 = vadd.f32 %v783, %v801
        %803 = vmatmul.bf16.gmra.mxu0 %v328
        %v804 = vpop.f32.mrf.mxu0
        %v805 = vadd.f32 %v786, %v804
        %v806 = vpop.f32.mrf.mxu0
        %v807 = vadd.f32 %v788, %v806
        %808 = vdwg.mxu0
        %v809 = vld [vmem:[#allocation7] ss:$2 sm:$0x3]
        %v811 = vperm.slane %v809, 0
        %v812 = vperm.slane %v809, 1
        %v815 = vmul.f32 %v724, %v811
        %v816 = vmul.f32 %v800, %v812
        %v817 = vmul.f32 %v726, %v811
        %v818 = vmul.f32 %v802, %v812
        %v819 = vmul.f32 %v729, %v811
        %v820 = vmul.f32 %v805, %v812
        %v821 = vmul.f32 %v731, %v811
        %v822 = vmul.f32 %v807, %v812
        %s823 = scalar_lea.vmem [#allocation7], 1
        %v824 = vld [vmem:[%s823] ss:$2 sm:$0x3]
        %v826 = vperm.slane %v824, 0
        %v827 = vperm.slane %v824, 1
        %v830 = vadd.f32 %v815, %v826
        %v831 = vadd.f32 %v816, %v827
        %v832 = vadd.f32 %v817, %v826
        %v833 = vadd.f32 %v818, %v827
        %v834 = vadd.f32 %v819, %v826
        %v835 = vadd.f32 %v820, %v827
        %v836 = vadd.f32 %v821, %v826
        %v837 = vadd.f32 %v822, %v827
        %v838 = vmax.f32 %v830, 0.0
        %v839 = vmax.f32 %v831, 0.0
        %v840 = vmax.f32 %v832, 0.0
        %v841 = vmax.f32 %v833, 0.0
        %v842 = vmax.f32 %v834, 0.0
        %v843 = vmax.f32 %v835, 0.0
        %v844 = vmax.f32 %v836, 0.0
        %v845 = vmax.f32 %v837, 0.0
        %846 = vst [vmem:[%s222] sm:$0xff] %v838
        %847 = vst [vmem:[%s222 + $0x8] sm:$0xff] %v839
        %848 = vst [vmem:[%s222 + $0x10] sm:$0xff] %v840
        %849 = vst [vmem:[%s222 + $0x18] sm:$0xff] %v841
        %850 = vst [vmem:[%s222 + $0x20] sm:$0xff] %v842
        %851 = vst [vmem:[%s222 + $0x28] sm:$0xff] %v843
        %852 = vst [vmem:[%s222 + $0x30] sm:$0xff] %v844
        %853 = vst [vmem:[%s222 + $0x38] sm:$0xff] %v845
        %s854 = sand.u32 %s97, 1
        %s855 = scalar_lea.sflag [#allocation4], %s854
        %s856 = sand.u32 %s97, 1
        %s857 = smul.addr %s856, 64
        %s858 = scalar_lea.vmem [#allocation8], %s857
        // Predicated region
        $region45: #{tpu_custom_call.1} parent=31 // pred_check
          %p859 = pneg %p107
        $region46: #{tpu_custom_call.1} parent=31 // pred_check_branch
          %861 = sbr.rel (%p859) target = $region48
        $region47: #{tpu_custom_call.1} parent=31 // pred_region
          %s862 = smul.u32 4, %s21
          %864 = vsyncadd %s855, 0
          %s865 = smul.addr %s862, 2
          %s866 = smul.addr %s865, 8
          %s867 = scalar_lea.hbm %s3, %s866
          %s868 = sshll.u32 %s858, 4
          %s869 = int_to_ptr.vmem [resolvable:$true] %s868
          %s870 = sshll.u32 %s867, 4
          %s871 = int_to_ptr.hbm [resolvable:$true] %s870
          %876 = dma.vmem_to_hbm [thread:$0]  %s869, 1024, %s871, %s855, 256, 256, 16
        $region48: #{tpu_custom_call.1} parent=31 // pred_fallthru
          _
      $region32: #{tpu_custom_call.1} parent=5 // pred_fallthru
        _
      %p877 = scmp.le.s32.totalorder 2, %s16
      // Predicated region
      $region49: #{tpu_custom_call.1} parent=5 // pred_check
        %p878 = pneg %p877
      $region50: #{tpu_custom_call.1} parent=5 // pred_check_branch
        %880 = sbr.rel (%p878) target = $region52
      $region51: #{tpu_custom_call.1} parent=5 // pred_region
        %s881 = ssub.s32 %s16, 2
        // Predicated region
        $region53: #{tpu_custom_call.1} parent=51 // pred_check
          %p882 = pneg %p113
        $region54: #{tpu_custom_call.1} parent=51 // pred_check_branch
          %884 = sbr.rel (%p882) target = $region56
        $region55: #{tpu_custom_call.1} parent=51 // pred_region
          %s885 = sand.u32 %s98, 1
          %s886 = scalar_lea.sflag [#allocation4], %s885
          %s887 = sand.u32 %s98, 1
          %s888 = smul.addr %s887, 64
          %s889 = scalar_lea.vmem [#allocation8], %s888
          %891 = dma.done %s886, 1024
        $region56: #{tpu_custom_call.1} parent=51 // pred_fallthru
          _
      $region52: #{tpu_custom_call.1} parent=5 // pred_fallthru
        _
    $region6: #{tpu_custom_call.1} parent=1 // loop_footer
      %s20 = sadd.s32 1, %s16
    $region7: #{tpu_custom_call.1} parent=1 // loop_footer_branch
      %15 = sbr.rel target = $region3
    $region8: #{tpu_custom_call.1} parent=1 // loop_exit
      _
    %892 = vsyncpa [#allocation3], 1
    %s893 = scalar_lea.sflag [#allocation3], 1
    %894 = vsyncpa %s893, 1
    %895 = vsyncpa [#allocation6], 1
    %896 = vsyncpa [#allocation4], 1
    %s897 = scalar_lea.sflag [#allocation4], 1
    %898 = vsyncpa %s897, 1

</llo_original>
